<compile_context>
chip_gen: v7x
topology: tpu7x:2x2x1
jax: 0.10.0
libtpu: 0.0.40
codegen_flags: <defaults>
</compile_context>

<pallas_src>
from itertools import combinations

import jax
import jax.numpy as jnp
from jax.experimental import pallas as pl
from jax.experimental.pallas import tpu as pltpu

NEAR = 2.0
FAR = 6.0

_LANE = 512          # lane width per block (multiple of 128 -> unmasked stores)
_SUBLANE_ROWS = 256  # target sublane rows per block (multiple of 8)
                     # => 256*512 = 128K f32 per set per block (512 KiB)


def _round_up(x: int, m: int) -> int:
    return ((x + m - 1) // m) * m


def _pairwise_mean_kernel(starts_ref, ends_ref, out_ref, *, n_sets, scale):
    # starts_ref / ends_ref : (N, TP, LANE) spacing coords in [0, 1]
    # out_ref               : (TP, LANE)   scaled mean pairwise |median_i - median_j|
    sums = starts_ref[...] + ends_ref[...]          # (N, TP, LANE) f32

    if n_sets == 2:
        acc = jnp.abs(sums[0] - sums[1])
    elif n_sets == 3:
        # sum_{i<j} |x_i - x_j| = 2 * (max - min) for three values (VPU-only).
        mx = jnp.maximum(jnp.maximum(sums[0], sums[1]), sums[2])
        mn = jnp.minimum(jnp.minimum(sums[0], sums[1]), sums[2])
        acc = 2.0 * (mx - mn)
    else:
        # Fallback: unrolled pair loop (N is small in practice).
        acc = jnp.zeros(out_ref.shape, dtype=jnp.float32)
        for i, j in combinations(range(n_sets), 2):
            acc = acc + jnp.abs(sums[i] - sums[j])

    out_ref[...] = acc * scale


def pairwise_distance_mean(spacing_starts, spacing_ends):
    """Mean pairwise L1 distance between per-set sample medians.

    spacing_starts / spacing_ends: [N, R, S] float32 spacing coords in [0, 1]
    (RaySamples.spacing_starts[..., 0] of each set, stacked along N).
    Returns [R, S] float32 (the 'mean' reduction over all N*(N-1)/2 pairs).
    """
    n_sets, num_rays, num_samples = spacing_starts.shape
    if n_sets < 2:
        raise ValueError("need at least 2 sample sets for pairwise distances")
    num_pairs = n_sets * (n_sets - 1) // 2
    scale = 0.5 * (FAR - NEAR) / float(num_pairs)

    total = num_rays * num_samples
    s = spacing_starts.reshape(n_sets, total).astype(jnp.float32)
    e = spacing_ends.reshape(n_sets, total).astype(jnp.float32)

    # --- pad flattened element axis to a multiple of the lane width ---------
    total_l = _round_up(total, _LANE)
    if total_l != total:
        pad = total_l - total
        s = jnp.pad(s, ((0, 0), (0, pad)))
        e = jnp.pad(e, ((0, 0), (0, pad)))
    rows = total_l // _LANE
    s = s.reshape(n_sets, rows, _LANE)
    e = e.reshape(n_sets, rows, _LANE)

    # --- pick block rows: multiple of 8, large enough to amortize per-step
    #     overhead, but keep >= 2 grid steps when possible (v7x megacore). ----
    tile_rows = max(8, min(_SUBLANE_ROWS, _round_up(pl.cdiv(rows, 2), 8)))
    if tile_rows >= rows:
        tile_rows = rows                       # tiny input: one full block
    rows_p = _round_up(rows, tile_rows)
    if rows_p != rows:
        pad = rows_p - rows
        s = jnp.pad(s, ((0, 0), (0, pad), (0, 0)))
        e = jnp.pad(e, ((0, 0), (0, pad), (0, 0)))
    grid = (rows_p // tile_rows,)

    in_spec = pl.BlockSpec((n_sets, tile_rows, _LANE), lambda r: (0, r, 0))
    out_spec = pl.BlockSpec((tile_rows, _LANE), lambda r: (r, 0))

    kernel = lambda s_ref, e_ref, o_ref: _pairwise_mean_kernel(
        s_ref, e_ref, o_ref, n_sets=n_sets, scale=scale
    )

    out = pl.pallas_call(
        kernel,
        out_shape=jax.ShapeDtypeStruct((rows_p, _LANE), jnp.float32),
        grid_spec=pltpu.PrefetchScalarGridSpec(
            num_scalar_prefetch=0,
            grid=grid,
            in_specs=[in_spec, in_spec],
            out_specs=out_spec,
        ),
        compiler_params=pltpu.CompilerParams(
            dimension_semantics=("parallel",)
        ),
        cost_estimate=pl.CostEstimate(
            flops=6 * n_sets * total,
            transcendentals=0,
            bytes_accessed=(2 * n_sets + 1) * total * 4,
        ),
    )(s, e)

    return out.reshape(-1)[:total].reshape(num_rays, num_samples)


def _reference(spacing_starts, spacing_ends):
    e_starts = NEAR + spacing_starts * (FAR - NEAR)
    e_ends = NEAR + spacing_ends * (FAR - NEAR)
    medians = (e_starts + e_ends) * 0.5
    n = medians.shape[0]
    dists = [
        jnp.abs(medians[i] - medians[j]) for i, j in combinations(range(n), 2)
    ]
    return jnp.mean(jnp.stack(dists, axis=0), axis=0)


if __name__ == "__main__":
    key = jax.random.PRNGKey(0)
    # 3 sample sets, 16 rays, 120 samples/ray (non-multiple-of-128 S exercises
    # the lane-padding path).
    N, R, S = 3, 16, 120

    k1, k2 = jax.random.split(key)
    # spacing_starts / spacing_ends mimic RaySamples.spacing_starts[..., 0]:
    # monotone spacing coords in [0, 1].
    base = jnp.sort(jax.random.uniform(k1, (N, R, S), dtype=jnp.float32), axis=-1)
    widths = jax.random.uniform(k2, (N, R, S), dtype=jnp.float32) * 0.01
    spacing_starts = base
    spacing_ends = jnp.clip(base + widths, 0.0, 1.0)

    out = pairwise_distance_mean(spacing_starts, spacing_ends)
    out = jax.block_until_ready(out)

    ref = _reference(spacing_starts, spacing_ends)
    assert out.shape == (R, S)
    assert jnp.allclose(out, ref, atol=1e-5, rtol=1e-5)

    print("KERNEL_OK")
</pallas_src>

<mosaic_0001>
module attributes {stable_mosaic.version = 11 : i64} {
  func.func @_lambda_(%arg0: i32, %arg1: memref<3x4x512xf32, #tpu.memory_space<vmem>>, %arg2: memref<3x4x512xf32, #tpu.memory_space<vmem>>, %arg3: memref<4x512xf32, #tpu.memory_space<vmem>>) attributes {dimension_semantics = [#tpu.dimension_semantics<parallel>], iteration_bounds = array<i64: 1>, scalar_prefetch = 0 : i64, scratch_operands = 0 : i64, tpu.core_type = #tpu.core_type<tc>, window_params = [{transform_indices = @transform_0, window_bounds = array<i64: 3, 4, 512>}, {transform_indices = @transform_1, window_bounds = array<i64: 3, 4, 512>}, {transform_indices = @transform_2, window_bounds = array<i64: 4, 512>}]} {
    %c0 = arith.constant 0 : index
    %c0_0 = arith.constant 0 : index
    %c0_1 = arith.constant 0 : index
    %0 = vector.load %arg1[%c0, %c0_0, %c0_1] : memref<3x4x512xf32, #tpu.memory_space<vmem>>, vector<3x4x512xf32>
    %c0_2 = arith.constant 0 : index
    %c0_3 = arith.constant 0 : index
    %c0_4 = arith.constant 0 : index
    %1 = vector.load %arg2[%c0_2, %c0_3, %c0_4] : memref<3x4x512xf32, #tpu.memory_space<vmem>>, vector<3x4x512xf32>
    %2 = arith.addf %0, %1 : vector<3x4x512xf32>
    %3 = vector.extract_strided_slice %2 {offsets = [0, 0, 0], sizes = [1, 4, 512], strides = [1, 1, 1]} : vector<3x4x512xf32> to vector<1x4x512xf32>
    %4 = vector.shape_cast %3 : vector<1x4x512xf32> to vector<4x512xf32>
    %5 = vector.extract_strided_slice %2 {offsets = [1, 0, 0], sizes = [1, 4, 512], strides = [1, 1, 1]} : vector<3x4x512xf32> to vector<1x4x512xf32>
    %6 = vector.shape_cast %5 : vector<1x4x512xf32> to vector<4x512xf32>
    %7 = arith.maximumf %4, %6 : vector<4x512xf32>
    %8 = vector.extract_strided_slice %2 {offsets = [2, 0, 0], sizes = [1, 4, 512], strides = [1, 1, 1]} : vector<3x4x512xf32> to vector<1x4x512xf32>
    %9 = vector.shape_cast %8 : vector<1x4x512xf32> to vector<4x512xf32>
    %10 = arith.maximumf %7, %9 : vector<4x512xf32>
    %11 = vector.extract_strided_slice %2 {offsets = [0, 0, 0], sizes = [1, 4, 512], strides = [1, 1, 1]} : vector<3x4x512xf32> to vector<1x4x512xf32>
    %12 = vector.shape_cast %11 : vector<1x4x512xf32> to vector<4x512xf32>
    %13 = vector.extract_strided_slice %2 {offsets = [1, 0, 0], sizes = [1, 4, 512], strides = [1, 1, 1]} : vector<3x4x512xf32> to vector<1x4x512xf32>
    %14 = vector.shape_cast %13 : vector<1x4x512xf32> to vector<4x512xf32>
    %15 = arith.minimumf %12, %14 : vector<4x512xf32>
    %16 = vector.extract_strided_slice %2 {offsets = [2, 0, 0], sizes = [1, 4, 512], strides = [1, 1, 1]} : vector<3x4x512xf32> to vector<1x4x512xf32>
    %17 = vector.shape_cast %16 : vector<1x4x512xf32> to vector<4x512xf32>
    %18 = arith.minimumf %15, %17 : vector<4x512xf32>
    %19 = arith.subf %10, %18 : vector<4x512xf32>
    %cst = arith.constant 2.000000e+00 : f32
    %20 = vector.broadcast %cst : f32 to vector<4x512xf32>
    %21 = arith.mulf %20, %19 : vector<4x512xf32>
    %cst_5 = arith.constant 0.666666686 : f32
    %22 = vector.broadcast %cst_5 : f32 to vector<4x512xf32>
    %23 = arith.mulf %21, %22 : vector<4x512xf32>
    %c0_6 = arith.constant 0 : index
    %c0_7 = arith.constant 0 : index
    %24 = vector.load %arg3[%c0_6, %c0_7] : memref<4x512xf32, #tpu.memory_space<vmem>>, vector<4x512xf32>
    tpu.vector_store %arg3[%c0_6, %c0_7], %23 {strides = array<i32>} : memref<4x512xf32, #tpu.memory_space<vmem>>, vector<4x512xf32>,
    return
  }
  func.func @transform_0(%arg0: i32) -> (i32, i32, i32) {
    %c0_i32 = arith.constant 0 : i32
    %c0_i32_0 = arith.constant 0 : i32
    %c0_i32_1 = arith.constant 0 : i32
    return %c0_i32, %arg0, %c0_i32_0 : i32, i32, i32
  }
  func.func @transform_1(%arg0: i32) -> (i32, i32, i32) {
    %c0_i32 = arith.constant 0 : i32
    %c0_i32_0 = arith.constant 0 : i32
    %c0_i32_1 = arith.constant 0 : i32
    return %c0_i32, %arg0, %c0_i32_0 : i32, i32, i32
  }
  func.func @transform_2(%arg0: i32) -> (i32, i32) {
    %c0_i32 = arith.constant 0 : i32
    %c0_i32_0 = arith.constant 0 : i32
    return %arg0, %c0_i32 : i32, i32
  }
}

</mosaic_0001>

<llo_original>
// kernel: tpu_custom_call.1
$region0: #{tpu_custom_call.1}
  #allocation0 [shape = 'u32[]', space=smem, size = 0x4, offset = 0x4, fixed_abs, tag = 'smem constant byte address 0x4 - core index']
  #allocation1 [shape = 'u32[144,128]{1,0:T(1,128)}', space=vmem, size = 0x12000, scoped, tag = 'internal scratch']
  %s0 = inlined_call_operand.hbm [shape: f32[3,4,512], index: 0, kind: input, shape index: {}]
  %s1 = inlined_call_operand.hbm [shape: f32[3,4,512], index: 1, kind: input, shape index: {}]
  %s2 = inlined_call_operand.hbm [shape: f32[4,512], index: 2, kind: output, shape index: {}]
  %s3 = sld [smem:[#allocation0]]
  $region26: #{tpu_custom_call.1} parent=0
    _
  %s5 = ssub.s32 1, %s3
  %s6 = scalar_select 0, %s5, %s3
  $region1: #{tpu_custom_call.1} parent=0
    #allocation2 [shape = 'u8[24576]{0}', space=vmem, size = 0x6000, scoped, tag = 'input window, operand 0, single buffered']
    #allocation3 [shape = 's32[1]{0}', space=sflag, size = 0x4, scoped, tag = 'scoped memory for tpu_custom_call.1']
    #allocation4 [shape = 's32[1]{0}', space=sflag, size = 0x4, scoped, tag = 'scoped memory for tpu_custom_call.1']
    #allocation5 [shape = 'u8[24576]{0}', space=vmem, size = 0x6000, scoped, tag = 'input window, operand 1, single buffered']
    #allocation6 [shape = 's32[1]{0}', space=sflag, size = 0x4, scoped, tag = 'scoped memory for tpu_custom_call.1']
    #allocation7 [shape = 'u8[8192]{0}', space=vmem, size = 0x2000, scoped, tag = 'output window, operand 0, single buffered']
    %7 = vsyncpa [#allocation3], 0
    %8 = vsyncpa [#allocation6], 0
    %9 = vsyncpa [#allocation4], 0
    // Predicated region
    $region2: #{tpu_custom_call.1} parent=1 // pred_check
      _
    $region3: #{tpu_custom_call.1} parent=1 // pred_check_branch
      %11 = sbr.rel (0) target = $region5
    $region4: #{tpu_custom_call.1} parent=1 // pred_region
      %s13 = ssub.s32 768, 768
      %14 = vsyncadd [#allocation3], %s13
      %s15 = sshll.u32 [#allocation2], 4
      %s16 = int_to_ptr.vmem [resolvable:$true] %s15
      %21 = dma.hbm_to_vmem [thread:$0]  %s0, 768, %s16, [#allocation3], 256, 256, 16
    $region5: #{tpu_custom_call.1} parent=1 // pred_fallthru
      _
    // Predicated region
    $region6: #{tpu_custom_call.1} parent=1 // pred_check
      _
    $region7: #{tpu_custom_call.1} parent=1 // pred_check_branch
      %23 = sbr.rel (0) target = $region9
    $region8: #{tpu_custom_call.1} parent=1 // pred_region
      %s25 = ssub.s32 768, 768
      %26 = vsyncadd [#allocation6], %s25
      %s27 = sshll.u32 [#allocation5], 4
      %s28 = int_to_ptr.vmem [resolvable:$true] %s27
      %33 = dma.hbm_to_vmem [thread:$0]  %s1, 768, %s28, [#allocation6], 256, 256, 16
    $region9: #{tpu_custom_call.1} parent=1 // pred_fallthru
      _
    // Predicated region
    $region10: #{tpu_custom_call.1} parent=1 // pred_check
      _
    $region11: #{tpu_custom_call.1} parent=1 // pred_check_branch
      %35 = sbr.rel (0) target = $region13
    $region12: #{tpu_custom_call.1} parent=1 // pred_region
      %36 = dma.done [#allocation3], 768
    $region13: #{tpu_custom_call.1} parent=1 // pred_fallthru
      _
    // Predicated region
    $region14: #{tpu_custom_call.1} parent=1 // pred_check
      _
    $region15: #{tpu_custom_call.1} parent=1 // pred_check_branch
      %38 = sbr.rel (0) target = $region17
    $region16: #{tpu_custom_call.1} parent=1 // pred_region
      %39 = dma.done [#allocation6], 768
    $region17: #{tpu_custom_call.1} parent=1 // pred_fallthru
      _
    %v40 = vld [vmem:[#allocation2] sm:$0xff]
    %v41 = vld [vmem:[#allocation2 + $0x8] sm:$0xff]
    %v42 = vld [vmem:[#allocation2 + $0x10] sm:$0xff]
    %v43 = vld [vmem:[#allocation2 + $0x18] sm:$0xff]
    %v44 = vld [vmem:[#allocation2 + $0x20] sm:$0xff]
    %v45 = vld [vmem:[#allocation2 + $0x28] sm:$0xff]
    %v46 = vld [vmem:[#allocation5] sm:$0xff]
    %v47 = vld [vmem:[#allocation5 + $0x8] sm:$0xff]
    %v48 = vld [vmem:[#allocation5 + $0x10] sm:$0xff]
    %v49 = vld [vmem:[#allocation5 + $0x18] sm:$0xff]
    %v50 = vld [vmem:[#allocation5 + $0x20] sm:$0xff]
    %v51 = vld [vmem:[#allocation5 + $0x28] sm:$0xff]
    %v52 = vadd.f32 %v40, %v46
    %v53 = vadd.f32 %v41, %v47
    %v54 = vadd.f32 %v42, %v48
    %v55 = vadd.f32 %v43, %v49
    %v56 = vadd.f32 %v44, %v50
    %v57 = vadd.f32 %v45, %v51
    %v58 = vmax.f32 %v52, %v54
    %v59 = vmax.f32 %v53, %v55
    %v60 = vmax.f32 %v58, %v56
    %v61 = vmax.f32 %v59, %v57
    %v62 = vmin.f32 %v52, %v54
    %v63 = vmin.f32 %v53, %v55
    %v64 = vmin.f32 %v62, %v56
    %v65 = vmin.f32 %v63, %v57
    %v66 = vsub.f32 %v60, %v64
    %v67 = vsub.f32 %v61, %v65
    %v68 = vmul.f32 %v66, 2.0
    %v69 = vmul.f32 %v67, 2.0
    %v70 = vmul.f32 %v68, 0.6666667
    %v71 = vmul.f32 %v69, 0.6666667
    %72 = vst [vmem:[#allocation7] sm:$0xff] %v70
    %73 = vst [vmem:[#allocation7 + $0x8] sm:$0xff] %v71
    // Predicated region
    $region18: #{tpu_custom_call.1} parent=1 // pred_check
      _
    $region19: #{tpu_custom_call.1} parent=1 // pred_check_branch
      %75 = sbr.rel (0) target = $region21
    $region20: #{tpu_custom_call.1} parent=1 // pred_region
      %s77 = ssub.s32 256, 256
      %78 = vsyncadd [#allocation4], %s77
      %s80 = sshll.u32 [#allocation7], 4
      %s81 = int_to_ptr.vmem [resolvable:$true] %s80
      %83 = dma.vmem_to_hbm [thread:$0]  %s81, 256, %s2, [#allocation4]
    $region21: #{tpu_custom_call.1} parent=1 // pred_fallthru
      _
    // Predicated region
    $region22: #{tpu_custom_call.1} parent=1 // pred_check
      _
    $region23: #{tpu_custom_call.1} parent=1 // pred_check_branch
      %85 = sbr.rel (0) target = $region25
    $region24: #{tpu_custom_call.1} parent=1 // pred_region
      %86 = dma.done [#allocation4], 256
    $region25: #{tpu_custom_call.1} parent=1 // pred_fallthru
      _
    %87 = vsyncpa [#allocation3], 1
    %88 = vsyncpa [#allocation6], 1
    %89 = vsyncpa [#allocation4], 1

</llo_original>
